<compile_context>
chip_gen: v7x
topology: tpu7x:2x2x1
jax: 0.10.0
libtpu: 0.0.40
codegen_flags: <defaults>
</compile_context>

<pallas_src>
import functools

import jax
import jax.numpy as jnp
from jax import lax
from jax.experimental import pallas as pl
from jax.experimental.pallas import tpu as pltpu


def _round_up(a, b):
    return (a + b - 1) // b * b


def _conv_overscan_kernel(x_ref, halo_ref, w_ref, b_ref, o_ref, *,
                          tap_offsets, lsub, halo_max, precision):
    """One (batch, lane-chunk) grid step of the flattened stride-1 conv.

    x_ref:    (1, Cin, Lblk)    flattened image chunk (operand dtype)
    halo_ref: (1, Cin, Lsub)    first Lsub lanes of the NEXT chunk (tap halo)
    w_ref:    (C_out, T*Cin)    folded per-tap weight matrix (operand dtype)
    b_ref:    (C_out, 1)        bias (f32)
    o_ref:    (1, C_out, Lblk)  conv output (out dtype)
    """
    lblk = o_ref.shape[-1]
    nsub = lblk // lsub
    w = w_ref[...]                       # (C_out, T*Cin) -- loaded once
    b = b_ref[...]                       # (C_out, 1)

    for j in range(nsub):                # static unroll; nsub is small
        off = j * lsub
        if off + lsub + halo_max <= lblk:
            # interior sub-tile: every tap window lies inside the body block.
            pieces = [x_ref[0, :, off + d: off + d + lsub] for d in tap_offsets]
        else:
            # boundary sub-tile: small body-tail + halo window (<= 2*Lsub lanes).
            ext = jnp.concatenate([x_ref[0, :, off:lblk], halo_ref[0, :, :]],
                                  axis=-1)
            pieces = [ext[:, d: d + lsub] for d in tap_offsets]
        # in-VMEM im2col stack: (T*Cin, Lsub), sublane-aligned (Cin padded).
        stk = pieces[0] if len(pieces) == 1 else jnp.concatenate(pieces, axis=0)
        # one deep-K MXU matmul, f32 accumulation, bias epilogue in f32.
        acc = jnp.dot(w, stk, preferred_element_type=jnp.float32,
                      precision=precision)
        acc = acc + b
        o_ref[0, :, off:off + lsub] = acc.astype(o_ref.dtype)


def conv_layer_pallas(x, weight, bias, stride, *,
                      operand_dtype=None, out_dtype=None,
                      lsub_lanes=512, target_block_elems=8192,
                      vmem_limit_bytes=None, mxu_precision=None):
    """ReflectionPad2d(k//2) + Conv2d(stride, bias) for NCHW `x`.

    operand_dtype / out_dtype default to x.dtype (no silent bf16 downcast);
    pass jnp.bfloat16 explicitly for the fast MXU path on v6e/v7x.
    Pass mxu_precision=lax.Precision.HIGHEST for strict f32 parity.
    """
    n, c_in, h, w = x.shape
    c_out, c_in_w, kh_, kw_ = weight.shape
    assert c_in == c_in_w and kh_ == kw_, "square kernels / matching channels only"
    k = kh_
    s = int(stride)
    pad = k // 2
    op_dtype = jnp.dtype(operand_dtype) if operand_dtype is not None else jnp.dtype(x.dtype)
    o_dtype = jnp.dtype(out_dtype) if out_dtype is not None else jnp.dtype(x.dtype)

    # ---- reflection padding (wrapper glue, matches torch.nn.ReflectionPad2d)
    if pad > 0:
        x_pad = jnp.pad(x, ((0, 0), (0, 0), (pad, pad), (pad, pad)), mode="reflect")
    else:
        x_pad = x
    hp, wp = h + 2 * pad, w + 2 * pad
    h_out = (hp - k) // s + 1
    w_out = (wp - k) // s + 1

    # ---- stride-s conv -> stride-1 conv on the s*s polyphase decomposition
    kp = -(-k // s)                       # effective kernel size per dim
    hpp = h_out + kp - 1                  # effective input height (valid conv)
    wpp = w_out + kp - 1                  # effective input width
    if s == 1:
        x_eff, w_eff = x_pad, weight
    else:
        xs, ws = [], []
        for ph in range(s):
            for pw in range(s):
                xc = x_pad[:, :, ph::s, pw::s][:, :, :hpp, :wpp]
                xc = jnp.pad(xc, ((0, 0), (0, 0),
                                  (0, hpp - xc.shape[2]), (0, wpp - xc.shape[3])))
                xs.append(xc)
                kh_idx = [a * s + ph for a in range(kp) if a * s + ph < k]
                kw_idx = [a * s + pw for a in range(kp) if a * s + pw < k]
                wc = jnp.zeros((c_out, c_in, kp, kp), weight.dtype)
                if kh_idx and kw_idx:
                    wc = wc.at[:, :, :len(kh_idx), :len(kw_idx)].set(
                        weight[:, :, kh_idx, :][:, :, :, kw_idx])
                ws.append(wc)
        x_eff = jnp.concatenate(xs, axis=1)     # (n, s*s*C_in, hpp, wpp)
        w_eff = jnp.concatenate(ws, axis=1)     # (C_out, s*s*C_in, kp, kp)
    cin_eff = x_eff.shape[1]

    # ---- pad channels to the dtype sublane packing (aligned in-kernel stack)
    op_b = jnp.dtype(op_dtype).itemsize
    cin_align = 8 * max(1, 4 // op_b)           # 8 for f32, 16 for bf16
    cin_pad = _round_up(cin_eff, cin_align)
    if cin_pad != cin_eff:
        x_eff = jnp.pad(x_eff, ((0, 0), (0, cin_pad - cin_eff), (0, 0), (0, 0)))
        w_eff = jnp.pad(w_eff, ((0, 0), (0, cin_pad - cin_eff), (0, 0), (0, 0)))

    # ---- flattened-overscan geometry (always stride-1 here)
    tap_offsets = tuple(a * wpp + b for a in range(kp) for b in range(kp))
    t_count = kp * kp
    halo_max = (kp - 1) * wpp + (kp - 1)        # largest static tap offset
    lsub = max(_round_up(max(lsub_lanes, 128), 128),
               _round_up(max(halo_max, 1), 128))
    needed = h_out * wpp                        # stride-1 grid lanes we keep
    lblk = _round_up(min(max(target_block_elems, 4 * lsub),
                         _round_up(needed, lsub)), lsub)
    nsub = lblk // lsub
    n_blocks = -(-needed // lblk)
    p_total = n_blocks * lblk + lsub            # flat lanes we may touch

    x_flat = x_eff.reshape(n, cin_pad, hpp * wpp).astype(op_dtype)
    x_flat = jnp.pad(x_flat, ((0, 0), (0, 0), (0, p_total - hpp * wpp)))

    # folded weights: row t*cin_pad + ci  <->  tap t=(ah,aw), channel ci
    w_mat = w_eff.transpose(0, 2, 3, 1).reshape(c_out, t_count * cin_pad)
    w_mat = w_mat.astype(op_dtype)
    b_mat = bias.reshape(c_out, 1).astype(jnp.float32)

    # ---- VMEM budget (per grid step; inputs/outputs double-buffered)
    o_b = jnp.dtype(o_dtype).itemsize
    est = (2 * cin_pad * (lblk + lsub) * op_b     # body + halo (x2 buffers)
           + 2 * c_out * lblk * o_b               # output (x2 buffers)
           + c_out * t_count * cin_pad * op_b     # folded weights (resident)
           + t_count * cin_pad * lsub * op_b      # im2col stack
           + 2 * cin_pad * lsub * op_b            # boundary window
           + c_out * lsub * 4)                    # f32 accumulator
    cp_kwargs = dict(dimension_semantics=("parallel", "parallel"))
    if vmem_limit_bytes is not None:
        cp_kwargs["vmem_limit_bytes"] = int(vmem_limit_bytes)
    elif est > (12 << 20):
        # default scoped VMEM: 16 MiB (v5e) / 32 MiB (v6e, v7x); raise gently.
        cp_kwargs["vmem_limit_bytes"] = int(min(est * 13 // 10 + (2 << 20), 48 << 20))

    kernel = functools.partial(_conv_overscan_kernel,
                               tap_offsets=tap_offsets, lsub=lsub,
                               halo_max=halo_max, precision=mxu_precision)

    out_over = pl.pallas_call(
        kernel,
        out_shape=jax.ShapeDtypeStruct((n, c_out, n_blocks * lblk), o_dtype),
        grid_spec=pltpu.PrefetchScalarGridSpec(
            num_scalar_prefetch=0,
            grid=(n, n_blocks),
            in_specs=[
                # body chunk of the flattened image
                pl.BlockSpec((1, cin_pad, lblk), lambda b, i: (b, 0, i)),
                # halo: first Lsub lanes of the NEXT chunk of the SAME array
                pl.BlockSpec((1, cin_pad, lsub),
                             lambda b, i: (b, 0, (i + 1) * nsub)),
                # folded weights / bias: tiny, fully resident
                pl.BlockSpec((c_out, t_count * cin_pad), lambda b, i: (0, 0)),
                pl.BlockSpec((c_out, 1), lambda b, i: (0, 0)),
            ],
            out_specs=pl.BlockSpec((1, c_out, lblk), lambda b, i: (b, 0, i)),
        ),
        compiler_params=pltpu.CompilerParams(**cp_kwargs),
    )(x_flat, x_flat, w_mat, b_mat)

    # lanes [0, h_out*wpp) map to the (h_out, wpp) grid; keep the first w_out
    # columns of each row (the (wpp - w_out) extras are tiny overscan waste).
    out = out_over[:, :, :h_out * wpp].reshape(n, c_out, h_out, wpp)
    return out[:, :, :, :w_out]


def _reference(x, weight, bias, stride):
    """Pure-JAX reference (lax.conv) for correctness checking."""
    pad = weight.shape[-1] // 2
    x_pad = jnp.pad(x, ((0, 0), (0, 0), (pad, pad), (pad, pad)), mode="reflect")
    out = lax.conv_general_dilated(
        x_pad, weight, window_strides=(stride, stride), padding="VALID",
        dimension_numbers=("NCHW", "OIHW", "NCHW"),
        precision=lax.Precision.HIGHEST,
    )
    return out + bias.reshape(1, -1, 1, 1)


if __name__ == "__main__":
    key = jax.random.PRNGKey(0)
    k_x, k_w, k_b = jax.random.split(key, 3)

    N, C_IN, H, W = 2, 4, 16, 16
    C_OUT = 8

    x = jax.random.normal(k_x, (N, C_IN, H, W), dtype=jnp.float32)

    for ksz in (3, 9):
        kw_, kb_ = jax.random.split(jax.random.fold_in(k_w, ksz))
        weight = 0.1 * jax.random.normal(kw_, (C_OUT, C_IN, ksz, ksz), jnp.float32)
        bias = 0.1 * jax.random.normal(kb_, (C_OUT,), jnp.float32)

        for stride in (1, 2):
            ref = _reference(x, weight, bias, stride)

            # default path: f32 operands, f32 output (matches the nn.Module).
            fn32 = jax.jit(functools.partial(conv_layer_pallas, stride=stride))
            out32 = jax.block_until_ready(fn32(x, weight, bias))
            assert out32.shape == ref.shape, (out32.shape, ref.shape)
            assert jnp.allclose(out32, ref, atol=2e-2, rtol=2e-2), \
                f"f32 mismatch (k={ksz}, stride={stride})"

            # opt-in bf16 MXU operands (v6e/v7x fast path), loose check.
            fn16 = jax.jit(functools.partial(conv_layer_pallas, stride=stride,
                                             operand_dtype=jnp.bfloat16))
            out16 = jax.block_until_ready(fn16(x, weight, bias))
            assert out16.shape == ref.shape
            assert jnp.allclose(out16, ref, atol=2e-1, rtol=2e-1), \
                f"bf16 mismatch (k={ksz}, stride={stride})"

    # exercise the multi-sub-tile (interior + boundary) path explicitly.
    kw_, kb_ = jax.random.split(jax.random.fold_in(k_w, 3))
    weight = 0.1 * jax.random.normal(kw_, (C_OUT, C_IN, 3, 3), jnp.float32)
    bias = 0.1 * jax.random.normal(kb_, (C_OUT,), jnp.float32)
    ref = _reference(x, weight, bias, 1)
    fn_small = jax.jit(functools.partial(conv_layer_pallas, stride=1,
                                         lsub_lanes=128, target_block_elems=512))
    out_small = jax.block_until_ready(fn_small(x, weight, bias))
    assert out_small.shape == ref.shape
    assert jnp.allclose(out_small, ref, atol=2e-2, rtol=2e-2), "small-tile mismatch"

    print("KERNEL_OK")
</pallas_src>

<mosaic_0001>
module attributes {stable_mosaic.version = 11 : i64} {
  func.func @_conv_overscan_kernel(%arg0: i32, %arg1: i32, %arg2: memref<1x8x512xf32, #tpu.memory_space<vmem>>, %arg3: memref<1x8x512xf32, #tpu.memory_space<vmem>>, %arg4: memref<8x72xf32, #tpu.memory_space<vmem>>, %arg5: memref<8x1xf32, #tpu.memory_space<vmem>>, %arg6: memref<1x8x512xf32, #tpu.memory_space<vmem>>) attributes {dimension_semantics = [#tpu.dimension_semantics<parallel>, #tpu.dimension_semantics<parallel>], iteration_bounds = array<i64: 2, 1>, scalar_prefetch = 0 : i64, scratch_operands = 0 : i64, tpu.core_type = #tpu.core_type<tc>, window_params = [{transform_indices = @transform_0, window_bounds = array<i64: 1, 8, 512>}, {transform_indices = @transform_1, window_bounds = array<i64: 1, 8, 512>}, {pipeline_mode = #tpu.pipeline_mode<synchronous>, transform_indices = @transform_2, window_bounds = array<i64: 8, 72>}, {pipeline_mode = #tpu.pipeline_mode<synchronous>, transform_indices = @transform_3, window_bounds = array<i64: 8, 1>}, {transform_indices = @transform_4, window_bounds = array<i64: 1, 8, 512>}]} {
    %c0 = arith.constant 0 : index
    %c0_0 = arith.constant 0 : index
    %0 = vector.load %arg4[%c0, %c0_0] : memref<8x72xf32, #tpu.memory_space<vmem>>, vector<8x72xf32>
    %c0_1 = arith.constant 0 : index
    %c0_2 = arith.constant 0 : index
    %1 = vector.load %arg5[%c0_1, %c0_2] : memref<8x1xf32, #tpu.memory_space<vmem>>, vector<8x1xf32>
    %c0_3 = arith.constant 0 : index
    %c0_4 = arith.constant 0 : index
    %c0_5 = arith.constant 0 : index
    %2 = vector.load %arg2[%c0_3, %c0_4, %c0_5] : memref<1x8x512xf32, #tpu.memory_space<vmem>>, vector<1x8x512xf32>
    %3 = vector.shape_cast %2 : vector<1x8x512xf32> to vector<8x512xf32>
    %c0_6 = arith.constant 0 : index
    %c0_7 = arith.constant 0 : index
    %c0_8 = arith.constant 0 : index
    %4 = vector.load %arg3[%c0_6, %c0_7, %c0_8] : memref<1x8x512xf32, #tpu.memory_space<vmem>>, vector<1x8x512xf32>
    %5 = vector.shape_cast %4 : vector<1x8x512xf32> to vector<8x512xf32>
    %6 = tpu.concatenate %3, %5 in 1 : vector<8x512xf32>, vector<8x512xf32> -> vector<8x1024xf32>
    %7 = vector.extract_strided_slice %6 {offsets = [0, 0], sizes = [8, 512], strides = [1, 1]} : vector<8x1024xf32> to vector<8x512xf32>
    %8 = vector.extract_strided_slice %6 {offsets = [0, 1], sizes = [8, 512], strides = [1, 1]} : vector<8x1024xf32> to vector<8x512xf32>
    %9 = vector.extract_strided_slice %6 {offsets = [0, 2], sizes = [8, 512], strides = [1, 1]} : vector<8x1024xf32> to vector<8x512xf32>
    %10 = vector.extract_strided_slice %6 {offsets = [0, 18], sizes = [8, 512], strides = [1, 1]} : vector<8x1024xf32> to vector<8x512xf32>
    %11 = vector.extract_strided_slice %6 {offsets = [0, 19], sizes = [8, 512], strides = [1, 1]} : vector<8x1024xf32> to vector<8x512xf32>
    %12 = vector.extract_strided_slice %6 {offsets = [0, 20], sizes = [8, 512], strides = [1, 1]} : vector<8x1024xf32> to vector<8x512xf32>
    %13 = vector.extract_strided_slice %6 {offsets = [0, 36], sizes = [8, 512], strides = [1, 1]} : vector<8x1024xf32> to vector<8x512xf32>
    %14 = vector.extract_strided_slice %6 {offsets = [0, 37], sizes = [8, 512], strides = [1, 1]} : vector<8x1024xf32> to vector<8x512xf32>
    %15 = vector.extract_strided_slice %6 {offsets = [0, 38], sizes = [8, 512], strides = [1, 1]} : vector<8x1024xf32> to vector<8x512xf32>
    %16 = tpu.concatenate %7, %8, %9, %10, %11, %12, %13, %14, %15 in 0 : vector<8x512xf32>, vector<8x512xf32>, vector<8x512xf32>, vector<8x512xf32>, vector<8x512xf32>, vector<8x512xf32>, vector<8x512xf32>, vector<8x512xf32>, vector<8x512xf32> -> vector<72x512xf32>
    %cst = arith.constant dense<0.000000e+00> : vector<8x512xf32>
    %17 = tpu.matmul %0, %16, %cst {dimension_numbers = #tpu.dot_dimension_numbers<[1], [0], [0], [1], [0, 0, 1, 1], [], []>} : vector<8x72xf32>, vector<72x512xf32>, vector<8x512xf32> -> vector<8x512xf32>
    %18 = vector.broadcast %1 : vector<8x1xf32> to vector<8x512xf32>
    %19 = arith.addf %17, %18 : vector<8x512xf32>
    %c0_9 = arith.constant 0 : index
    %c0_10 = arith.constant 0 : index
    %c0_11 = arith.constant 0 : index
    %20 = vector.load %arg6[%c0_9, %c0_10, %c0_11] : memref<1x8x512xf32, #tpu.memory_space<vmem>>, vector<1x8x512xf32>
    %21 = vector.shape_cast %20 : vector<1x8x512xf32> to vector<8x512xf32>
    %22 = vector.shape_cast %19 : vector<8x512xf32> to vector<1x8x512xf32>
    tpu.vector_store %arg6[%c0_9, %c0_10, %c0_11], %22 {strides = array<i32>} : memref<1x8x512xf32, #tpu.memory_space<vmem>>, vector<1x8x512xf32>,
    return
  }
  func.func @transform_0(%arg0: i32, %arg1: i32) -> (i32, i32, i32) {
    %c0_i32 = arith.constant 0 : i32
    %c0_i32_0 = arith.constant 0 : i32
    return %arg0, %c0_i32, %arg1 : i32, i32, i32
  }
  func.func @transform_1(%arg0: i32, %arg1: i32) -> (i32, i32, i32) {
    %c1_i32 = arith.constant 1 : i32
    %0 = arith.addi %arg1, %c1_i32 : i32
    %c1_i32_0 = arith.constant 1 : i32
    %1 = arith.muli %0, %c1_i32_0 : i32
    %c0_i32 = arith.constant 0 : i32
    %c0_i32_1 = arith.constant 0 : i32
    return %arg0, %c0_i32, %1 : i32, i32, i32
  }
  func.func @transform_2(%arg0: i32, %arg1: i32) -> (i32, i32) {
    %c0_i32 = arith.constant 0 : i32
    %c0_i32_0 = arith.constant 0 : i32
    %c0_i32_1 = arith.constant 0 : i32
    return %c0_i32, %c0_i32_0 : i32, i32
  }
  func.func @transform_3(%arg0: i32, %arg1: i32) -> (i32, i32) {
    %c0_i32 = arith.constant 0 : i32
    %c0_i32_0 = arith.constant 0 : i32
    %c0_i32_1 = arith.constant 0 : i32
    return %c0_i32, %c0_i32_0 : i32, i32
  }
  func.func @transform_4(%arg0: i32, %arg1: i32) -> (i32, i32, i32) {
    %c0_i32 = arith.constant 0 : i32
    %c0_i32_0 = arith.constant 0 : i32
    return %arg0, %c0_i32, %arg1 : i32, i32, i32
  }
}

</mosaic_0001>

<llo_original>
// kernel: conv_layer_pallas.1
$region0: #{conv_layer_pallas.1}
  #allocation0 [shape = 'u32[]', space=smem, size = 0x4, offset = 0x4, fixed_abs, tag = 'smem constant byte address 0x4 - core index']
  #allocation1 [shape = 'u32[144,128]{1,0:T(1,128)}', space=vmem, size = 0x12000, scoped, tag = 'internal scratch']
  %s0 = inlined_call_operand.vmem [shape: f32[2,8,1024], index: 0, kind: input, shape index: {}, may-alias: {0,1}]
  %s1 = inlined_call_operand.vmem [shape: f32[2,8,1024], index: 1, kind: input, shape index: {}, may-alias: {0,1}]
  %s2 = inlined_call_operand.vmem [shape: f32[8,72], index: 2, kind: input, shape index: {}]
  %s3 = inlined_call_operand.vmem [shape: f32[8,1], index: 3, kind: input, shape index: {}]
  %s4 = inlined_call_operand.vmem [shape: f32[2,8,512], index: 4, kind: output, shape index: {}]
  %s5 = sld [smem:[#allocation0]]
  $region49: #{conv_layer_pallas.1} parent=0
    _
  %s7 = ssub.s32 1, %s5
  %s8 = scalar_select 0, %s7, %s5
  loop: start=0, step=1, limit=4
  $region2: #{conv_layer_pallas.1} parent=0 // loop_pre_header
    _
  $region3: #{conv_layer_pallas.1} parent=0 // loop_header
    %s10 = sphi 0, %s14
    %p11 = scmp.ge.s32.totalorder %s10, 4
    %s17 = sphi 0, %s29
    %s18 = sphi 0, %s25
    %s19 = sphi 0, %s17
    %s20 = sphi 0, %s18
    %s21 = sphi 0, %s19
    %s22 = sphi 0, %s20
    %s34 = sphi 0, %s36
    %s37 = sphi 0, %s34
    %s38 = sphi 0, %s37
    %s54 = sphi 0, %s38
    %s64 = sphi 0, %s66
    %s67 = sphi 0, %s64
    %s68 = sphi 0, %s67
    %s84 = sphi 0, %s68
    %s88 = sphi 0, %s88
    %s90 = sphi 0, %s88
    %s91 = sphi 0, %s90
    %s105 = sphi 0, %s91
    %s109 = sphi 0, %s109
    %s111 = sphi 0, %s109
    %s112 = sphi 0, %s111
    %s126 = sphi 0, %s112
    %s134 = sphi 0, %s136
    %s137 = sphi 0, %s134
    %s138 = sphi 0, %s137
    %s154 = sphi 0, %s138
  $region4: #{conv_layer_pallas.1} parent=0 // loop_header_branch
    %13 = sbr.rel (%p11) target = $region8
  $region5: #{conv_layer_pallas.1} parent=0 // loop_body
    %s15 = ssub.s32 %s10, 1
    %s16 = ssub.s32 %s10, 2
    %s23 = sadd.s32 1, %s18
    %p24 = scmp.ge.s32.totalorder %s23, 1
    %s25 = scalar_select %p24, 0, %s23
    %s26 = sadd.s32 1, %s17
    %s27 = scalar_select %p24, %s26, %s17
    %p28 = scmp.ge.s32.totalorder %s27, 2
    %s29 = scalar_select %p28, 0, %s27
    %s30 = ssub.s32 %s17, %s29
    %s31 = ssub.s32 %s18, %s25
    %s32 = sor.u32 %s30, %s31
    %p33 = scmp.eq.s32.totalorder %s32, 0
    %s35 = sadd.s32 %s34, 1
    %s36 = scalar_select %p33, %s34, %s35
    %p39 = pneg %p33
    %p40 = scmp.eq.s32.totalorder %s10, 1
    %p41 = por %p39, %p40
    %p42 = scmp.ne.s32.totalorder %s34, %s37
    %p43 = scmp.eq.s32.totalorder %s10, 0
    %p44 = por %p42, %p43
    %p45 = scmp.ne.s32.totalorder %s34, %s37
    %p46 = scmp.eq.s32.totalorder %s15, 1
    %p47 = por %p45, %p46
    %p48 = scmp.ne.s32.totalorder %s37, %s38
    %p49 = scmp.eq.s32.totalorder %s15, 0
    %p50 = por %p48, %p49
    %p51 = scmp.ne.s32.totalorder %s37, %s38
    %p52 = scmp.eq.s32.totalorder %s16, 1
    %p53 = por %p51, %p52
    %p55 = scmp.ne.s32.totalorder %s38, %s54
    %p56 = scmp.eq.s32.totalorder %s16, 0
    %p57 = por %p55, %p56
    %s58 = sadd.s32 %s18, 1
    %s59 = sadd.s32 %s25, 1
    %s60 = ssub.s32 %s17, %s29
    %s61 = ssub.s32 %s58, %s59
    %s62 = sor.u32 %s60, %s61
    %p63 = scmp.eq.s32.totalorder %s62, 0
    %s65 = sadd.s32 %s64, 1
    %s66 = scalar_select %p63, %s64, %s65
    %p69 = pneg %p63
    %p70 = scmp.eq.s32.totalorder %s10, 1
    %p71 = por %p69, %p70
    %p72 = scmp.ne.s32.totalorder %s64, %s67
    %p73 = scmp.eq.s32.totalorder %s10, 0
    %p74 = por %p72, %p73
    %p75 = scmp.ne.s32.totalorder %s64, %s67
    %p76 = scmp.eq.s32.totalorder %s15, 1
    %p77 = por %p75, %p76
    %p78 = scmp.ne.s32.totalorder %s67, %s68
    %p79 = scmp.eq.s32.totalorder %s15, 0
    %p80 = por %p78, %p79
    %p81 = scmp.ne.s32.totalorder %s67, %s68
    %p82 = scmp.eq.s32.totalorder %s16, 1
    %p83 = por %p81, %p82
    %p85 = scmp.ne.s32.totalorder %s68, %s84
    %p86 = scmp.eq.s32.totalorder %s16, 0
    %p87 = por %p85, %p86
    %s89 = sadd.s32 %s88, 1
    %p92 = scmp.eq.s32.totalorder %s10, 1
    %p93 = scmp.ne.s32.totalorder %s88, %s90
    %p94 = scmp.eq.s32.totalorder %s10, 0
    %p95 = por %p93, %p94
    %p96 = scmp.ne.s32.totalorder %s88, %s90
    %p97 = scmp.eq.s32.totalorder %s15, 1
    %p98 = por %p96, %p97
    %p99 = scmp.ne.s32.totalorder %s90, %s91
    %p100 = scmp.eq.s32.totalorder %s15, 0
    %p101 = por %p99, %p100
    %p102 = scmp.ne.s32.totalorder %s90, %s91
    %p103 = scmp.eq.s32.totalorder %s16, 1
    %p104 = por %p102, %p103
    %p106 = scmp.ne.s32.totalorder %s91, %s105
    %p107 = scmp.eq.s32.totalorder %s16, 0
    %p108 = por %p106, %p107
    %s110 = sadd.s32 %s109, 1
    %p113 = scmp.eq.s32.totalorder %s10, 1
    %p114 = scmp.ne.s32.totalorder %s109, %s111
    %p115 = scmp.eq.s32.totalorder %s10, 0
    %p116 = por %p114, %p115
    %p117 = scmp.ne.s32.totalorder %s109, %s111
    %p118 = scmp.eq.s32.totalorder %s15, 1
    %p119 = por %p117, %p118
    %p120 = scmp.ne.s32.totalorder %s111, %s112
    %p121 = scmp.eq.s32.totalorder %s15, 0
    %p122 = por %p120, %p121
    %p123 = scmp.ne.s32.totalorder %s111, %s112
    %p124 = scmp.eq.s32.totalorder %s16, 1
    %p125 = por %p123, %p124
    %p127 = scmp.ne.s32.totalorder %s112, %s126
    %p128 = scmp.eq.s32.totalorder %s16, 0
    %p129 = por %p127, %p128
    %s130 = ssub.s32 %s17, %s29
    %s131 = ssub.s32 %s18, %s25
    %s132 = sor.u32 %s130, %s131
    %p133 = scmp.eq.s32.totalorder %s132, 0
    %s135 = sadd.s32 %s134, 1
    %s136 = scalar_select %p133, %s134, %s135
    %p139 = pneg %p133
    %p140 = scmp.eq.s32.totalorder %s10, 1
    %p141 = por %p139, %p140
    %p142 = scmp.ne.s32.totalorder %s134, %s137
    %p143 = scmp.eq.s32.totalorder %s10, 0
    %p144 = por %p142, %p143
    %p145 = scmp.ne.s32.totalorder %s134, %s137
    %p146 = scmp.eq.s32.totalorder %s15, 1
    %p147 = por %p145, %p146
    %p148 = scmp.ne.s32.totalorder %s137, %s138
    %p149 = scmp.eq.s32.totalorder %s15, 0
    %p150 = por %p148, %p149
    %p151 = scmp.ne.s32.totalorder %s137, %s138
    %p152 = scmp.eq.s32.totalorder %s16, 1
    %p153 = por %p151, %p152
    %p155 = scmp.ne.s32.totalorder %s138, %s154
    %p156 = scmp.eq.s32.totalorder %s16, 0
    %p157 = por %p155, %p156
    %p158 = scmp.le.s32.totalorder 1, %s10
    %p159 = scmp.lt.s32.totalorder %s10, 3
    %p160 = pnand %p158, %p159
    %p161 = pneg %p160
    // Predicated region
    $region9: #{conv_layer_pallas.1} parent=5 // pred_check
      _
    $region10: #{conv_layer_pallas.1} parent=5 // pred_check_branch
      %163 = sbr.rel (%p160) target = $region12
    $region11: #{conv_layer_pallas.1} parent=5 // pred_region
      %s164 = ssub.s32 %s10, 1
      // Predicated region
      $region13: #{conv_layer_pallas.1} parent=11 // pred_check
        %p165 = pneg %p101
      $region14: #{conv_layer_pallas.1} parent=11 // pred_check_branch
        %167 = sbr.rel (%p165) target = $region16
      $region15: #{conv_layer_pallas.1} parent=11 // pred_region
        _
      $region16: #{conv_layer_pallas.1} parent=11 // pred_fallthru
        _
      // Predicated region
      $region17: #{conv_layer_pallas.1} parent=11 // pred_check
        %p168 = pneg %p122
      $region18: #{conv_layer_pallas.1} parent=11 // pred_check_branch
        %170 = sbr.rel (%p168) target = $region20
      $region19: #{conv_layer_pallas.1} parent=11 // pred_region
        _
      $region20: #{conv_layer_pallas.1} parent=11 // pred_fallthru
        _
    $region12: #{conv_layer_pallas.1} parent=5 // pred_fallthru
      _
    %p171 = scmp.lt.s32.totalorder %s10, 2
    // Predicated region
    $region21: #{conv_layer_pallas.1} parent=5 // pred_check
      %p172 = pneg %p171
    $region22: #{conv_layer_pallas.1} parent=5 // pred_check_branch
      %174 = sbr.rel (%p172) target = $region24
    $region23: #{conv_layer_pallas.1} parent=5 // pred_region
      // Predicated region
      $region25: #{conv_layer_pallas.1} parent=23 // pred_check
        %p175 = pneg %p44
      $region26: #{conv_layer_pallas.1} parent=23 // pred_check_branch
        %177 = sbr.rel (%p175) target = $region28
      $region27: #{conv_layer_pallas.1} parent=23 // pred_region
        %s178 = smul.u32 4, %s18
        %p179 = scmp.lt.s32.totalorder %s17, 1
        %s180 = scalar_select %p179, %s17, 1
        %p181 = scmp.lt.s32.totalorder %s178, 7
        %s182 = scalar_select %p181, %s178, 7
        %s183 = smul.addr %s180, 8
        %s184 = sadd.s32 %s182, %s183
        %s185 = smul.addr %s184, 8
        %s186 = scalar_lea.vmem %s0, %s185
        %s187 = smul.u32 4, %s18
      $region28: #{conv_layer_pallas.1} parent=23 // pred_fallthru
        _
      // Predicated region
      $region29: #{conv_layer_pallas.1} parent=23 // pred_check
        %p188 = pneg %p74
      $region30: #{conv_layer_pallas.1} parent=23 // pred_check_branch
        %190 = sbr.rel (%p188) target = $region32
      $region31: #{conv_layer_pallas.1} parent=23 // pred_region
        %s191 = sadd.s32 %s18, 1
        %s192 = smul.u32 4, %s191
        %p193 = scmp.lt.s32.totalorder %s17, 1
        %s194 = scalar_select %p193, %s17, 1
        %p195 = scmp.lt.s32.totalorder %s192, 7
        %s196 = scalar_select %p195, %s192, 7
        %s197 = smul.addr %s194, 8
        %s198 = sadd.s32 %s196, %s197
        %s199 = smul.addr %s198, 8
        %s200 = scalar_lea.vmem %s1, %s199
        %s201 = sadd.s32 %s18, 1
        %s202 = smul.u32 4, %s201
      $region32: #{conv_layer_pallas.1} parent=23 // pred_fallthru
        _
    $region24: #{conv_layer_pallas.1} parent=5 // pred_fallthru
      _
    %p203 = scmp.le.s32.totalorder 1, %s10
    %p204 = scmp.lt.s32.totalorder %s10, 3
    %p205 = pnand %p203, %p204
    %p206 = pneg %p205
    // Predicated region
    $region33: #{conv_layer_pallas.1} parent=5 // pred_check
      _
    $region34: #{conv_layer_pallas.1} parent=5 // pred_check_branch
      %208 = sbr.rel (%p205) target = $region36
    $region35: #{conv_layer_pallas.1} parent=5 // pred_region
      %s209 = ssub.s32 %s10, 1
      %s210 = smul.u32 4, %s20
      %p211 = scmp.lt.s32.totalorder %s19, 1
      %s212 = scalar_select %p211, %s19, 1
      %p213 = scmp.lt.s32.totalorder %s210, 7
      %s214 = scalar_select %p213, %s210, 7
      %s215 = smul.addr %s212, 8
      %s216 = sadd.s32 %s214, %s215
      %s217 = smul.addr %s216, 8
      %s218 = scalar_lea.vmem %s0, %s217
      %p219 = pneg %p50
      %p220 = pneg %p47
      %s221 = sadd.s32 %s20, 1
      %s222 = smul.u32 4, %s221
      %p223 = scmp.lt.s32.totalorder %s19, 1
      %s224 = scalar_select %p223, %s19, 1
      %p225 = scmp.lt.s32.totalorder %s222, 7
      %s226 = scalar_select %p225, %s222, 7
      %s227 = smul.addr %s224, 8
      %s228 = sadd.s32 %s226, %s227
      %s229 = smul.addr %s228, 8
      %s230 = scalar_lea.vmem %s1, %s229
      %p231 = pneg %p80
      %p232 = pneg %p77
      %p233 = pneg %p101
      %p234 = pneg %p98
      %p235 = pneg %p122
      %p236 = pneg %p119
      %p237 = pneg %p150
      %p238 = pneg %p147
      %s239 = smul.u32 4, %s20
      %p240 = scmp.lt.s32.totalorder %s19, 1
      %s241 = scalar_select %p240, %s19, 1
      %p242 = scmp.lt.s32.totalorder %s239, 3
      %s243 = scalar_select %p242, %s239, 3
      %s244 = smul.addr %s241, 4
      %s245 = sadd.s32 %s243, %s244
      %s246 = smul.addr %s245, 8
      %s247 = scalar_lea.vmem %s4, %s246
      %s248 = smul.u32 4, %s20
      %p249 = scmp.lt.s32.totalorder %s19, 1
      %s250 = scalar_select %p249, %s19, 1
      %p251 = scmp.lt.s32.totalorder %s248, 7
      %s252 = scalar_select %p251, %s248, 7
      %s253 = smul.addr %s250, 8
      %s254 = sadd.s32 %s252, %s253
      %s255 = smul.addr %s254, 8
      %s256 = scalar_lea.vmem %s0, %s255
      %s257 = smul.u32 4, %s20
      %s258 = sadd.s32 %s20, 1
      %s259 = smul.u32 4, %s258
      %p260 = scmp.lt.s32.totalorder %s19, 1
      %s261 = scalar_select %p260, %s19, 1
      %p262 = scmp.lt.s32.totalorder %s259, 7
      %s263 = scalar_select %p262, %s259, 7
      %s264 = smul.addr %s261, 8
      %s265 = sadd.s32 %s263, %s264
      %s266 = smul.addr %s265, 8
      %s267 = scalar_lea.vmem %s1, %s266
      %s268 = sadd.s32 %s20, 1
      %s269 = smul.u32 4, %s268
      %s270 = smul.u32 4, %s20
      %p271 = scmp.lt.s32.totalorder %s19, 1
      %s272 = scalar_select %p271, %s19, 1
      %p273 = scmp.lt.s32.totalorder %s270, 3
      %s274 = scalar_select %p273, %s270, 3
      %s275 = smul.addr %s272, 4
      %s276 = sadd.s32 %s274, %s275
      %s277 = smul.addr %s276, 8
      %s278 = scalar_lea.vmem %s4, %s277
      %s279 = smul.u32 4, %s20
      %v280 = vld [vmem:[%s2] sm:$0xff]
      %v281 = vld [vmem:[%s3] sm:$0xff]
      %v282 = vld [vmem:[%s256] sm:$0xff]
      %v283 = vld [vmem:[%s256 + $0x8] sm:$0xff]
      %v284 = vld [vmem:[%s256 + $0x10] sm:$0xff]
      %v285 = vld [vmem:[%s256 + $0x18] sm:$0xff]
      %v286 = vld [vmem:[%s267] sm:$0xff]
      %292 = vrot.lane.b32.xlu0 %v282, 127
      %v293 = vpop.permute.xlu0 %292
      %294 = vrot.lane.b32.xlu0 %v283, 127
      %v295 = vpop.permute.xlu0 %294
      %296 = vrot.lane.b32.xlu0 %v284, 127
      %v297 = vpop.permute.xlu0 %296
      %298 = vrot.lane.b32.xlu0 %v285, 127
      %v299 = vpop.permute.xlu0 %298
      %300 = vrot.lane.b32.xlu0 %v286, 127
      %v301 = vpop.permute.xlu0 %300
      %vm302 = vcmask 1039360
      %v303 = vsel %vm302, %v293, %v295
      %v304 = vsel %vm302, %v295, %v297
      %v305 = vsel %vm302, %v297, %v299
      %v306 = vsel %vm302, %v299, %v301
      %311 = vrot.lane.b32.xlu0 %v282, 126
      %v312 = vpop.permute.xlu0 %311
      %313 = vrot.lane.b32.xlu0 %v283, 126
      %v314 = vpop.permute.xlu0 %313
      %315 = vrot.lane.b32.xlu0 %v284, 126
      %v316 = vpop.permute.xlu0 %315
      %317 = vrot.lane.b32.xlu0 %v285, 126
      %v318 = vpop.permute.xlu0 %317
      %319 = vrot.lane.b32.xlu0 %v286, 126
      %v320 = vpop.permute.xlu0 %319
      %vm321 = vcmask 1031168
      %v322 = vsel %vm321, %v312, %v314
      %v323 = vsel %vm321, %v314, %v316
      %v324 = vsel %vm321, %v316, %v318
      %v325 = vsel %vm321, %v318, %v320
      %330 = vrot.lane.b32.xlu0 %v282, 110
      %v331 = vpop.permute.xlu0 %330
      %332 = vrot.lane.b32.xlu0 %v283, 110
      %v333 = vpop.permute.xlu0 %332
      %334 = vrot.lane.b32.xlu0 %v284, 110
      %v335 = vpop.permute.xlu0 %334
      %336 = vrot.lane.b32.xlu0 %v285, 110
      %v337 = vpop.permute.xlu0 %336
      %338 = vrot.lane.b32.xlu0 %v286, 110
      %v339 = vpop.permute.xlu0 %338
      %vm340 = vcmask 900096
      %v341 = vsel %vm340, %v331, %v333
      %v342 = vsel %vm340, %v333, %v335
      %v343 = vsel %vm340, %v335, %v337
      %v344 = vsel %vm340, %v337, %v339
      %349 = vrot.lane.b32.xlu0 %v282, 109
      %v350 = vpop.permute.xlu0 %349
      %351 = vrot.lane.b32.xlu0 %v283, 109
      %v352 = vpop.permute.xlu0 %351
      %353 = vrot.lane.b32.xlu0 %v284, 109
      %v354 = vpop.permute.xlu0 %353
      %355 = vrot.lane.b32.xlu0 %v285, 109
      %v356 = vpop.permute.xlu0 %355
      %357 = vrot.lane.b32.xlu0 %v286, 109
      %v358 = vpop.permute.xlu0 %357
      %vm359 = vcmask 891904
      %v360 = vsel %vm359, %v350, %v352
      %v361 = vsel %vm359, %v352, %v354
      %v362 = vsel %vm359, %v354, %v356
      %v363 = vsel %vm359, %v356, %v358
      %368 = vrot.lane.b32.xlu0 %v282, 108
      %v369 = vpop.permute.xlu0 %368
      %370 = vrot.lane.b32.xlu0 %v283, 108
      %v371 = vpop.permute.xlu0 %370
      %372 = vrot.lane.b32.xlu0 %v284, 108
      %v373 = vpop.permute.xlu0 %372
      %374 = vrot.lane.b32.xlu0 %v285, 108
      %v375 = vpop.permute.xlu0 %374
      %376 = vrot.lane.b32.xlu0 %v286, 108
      %v377 = vpop.permute.xlu0 %376
      %vm378 = vcmask 883712
      %v379 = vsel %vm378, %v369, %v371
      %v380 = vsel %vm378, %v371, %v373
      %v381 = vsel %vm378, %v373, %v375
      %v382 = vsel %vm378, %v375, %v377
      %387 = vrot.lane.b32.xlu0 %v282, 92
      %v388 = vpop.permute.xlu0 %387
      %389 = vrot.lane.b32.xlu0 %v283, 92
      %v390 = vpop.permute.xlu0 %389
      %391 = vrot.lane.b32.xlu0 %v284, 92
      %v392 = vpop.permute.xlu0 %391
      %393 = vrot.lane.b32.xlu0 %v285, 92
      %v394 = vpop.permute.xlu0 %393
      %395 = vrot.lane.b32.xlu0 %v286, 92
      %v396 = vpop.permute.xlu0 %395
      %vm397 = vcmask 752640
      %v398 = vsel %vm397, %v388, %v390
      %v399 = vsel %vm397, %v390, %v392
      %v400 = vsel %vm397, %v392, %v394
      %v401 = vsel %vm397, %v394, %v396
      %406 = vrot.lane.b32.xlu0 %v282, 91
      %v407 = vpop.permute.xlu0 %406
      %408 = vrot.lane.b32.xlu0 %v283, 91
      %v409 = vpop.permute.xlu0 %408
      %410 = vrot.lane.b32.xlu0 %v284, 91
      %v411 = vpop.permute.xlu0 %410
      %412 = vrot.lane.b32.xlu0 %v285, 91
      %v413 = vpop.permute.xlu0 %412
      %414 = vrot.lane.b32.xlu0 %v286, 91
      %v415 = vpop.permute.xlu0 %414
      %vm416 = vcmask 744448
      %v417 = vsel %vm416, %v407, %v409
      %v418 = vsel %vm416, %v409, %v411
      %v419 = vsel %vm416, %v411, %v413
      %v420 = vsel %vm416, %v413, %v415
      %425 = vrot.lane.b32.xlu0 %v282, 90
      %v426 = vpop.permute.xlu0 %425
      %427 = vrot.lane.b32.xlu0 %v283, 90
      %v428 = vpop.permute.xlu0 %427
      %429 = vrot.lane.b32.xlu0 %v284, 90
      %v430 = vpop.permute.xlu0 %429
      %431 = vrot.lane.b32.xlu0 %v285, 90
      %v432 = vpop.permute.xlu0 %431
      %433 = vrot.lane.b32.xlu0 %v286, 90
      %v434 = vpop.permute.xlu0 %433
      %vm435 = vcmask 736256
      %v436 = vsel %vm435, %v426, %v428
      %v437 = vsel %vm435, %v428, %v430
      %v438 = vsel %vm435, %v430, %v432
      %v439 = vsel %vm435, %v432, %v434
      %445 = vset.pattern.permute.xlu0 0
      %446 = vperm.xlu0 %445, %v281
      %v447 = vpop.permute.xlu0 %446
      %vm449 = vcmask 588800
      %v451 = vsel %vm449, %v280, 0
      %453 = vmatprep.subr.mxu0 %v283
      %454 = vmatpush1.msra.mxu0 %v282
      %455 = vmatprep.subr.mxu0 %v304
      %456 = vmatpush1.msra.mxu0 %v303
      %457 = vmatprep.subr.mxu0 %v323
      %458 = vmatpush1.msra.mxu0 %v322
      %459 = vmatprep.subr.mxu0 %v342
      %460 = vmatpush1.msra.mxu0 %v341
      %461 = vmatprep.subr.mxu0 %v361
      %462 = vmatpush1.msra.mxu0 %v360
      %463 = vmatprep.subr.mxu0 %v380
      %464 = vmatpush1.msra.mxu0 %v379
      %465 = vmatprep.subr.mxu0 %v399
      %466 = vmatpush1.msra.mxu0 %v398
      %467 = vmatprep.subr.mxu0 %v418
      %468 = vmatpush1.msra.mxu0 %v417
      %469 = vmatprep.subr.mxu0 %v437
      %470 = vmatpush1.msra.mxu0 %v436
      %471 = vmatprep.subr.mxu0 0.0
      %472 = vmatpush1.msra.mxu0 0.0
      %473 = vmatprep.subr.mxu0 0.0
      %474 = vmatpush1.msra.mxu0 0.0
      %475 = vmatprep.subr.mxu0 0.0
      %476 = vmatpush1.msra.mxu0 0.0
      %477 = vmatprep.subr.mxu0 0.0
      %478 = vmatpush1.msra.mxu0 0.0
      %479 = vmatprep.subr.mxu0 0.0
      %480 = vmatpush1.msra.mxu0 0.0
      %481 = vmatprep.subr.mxu0 0.0
      %482 = vmatpush1.msra.mxu0 0.0
      %483 = vmatprep.subr.mxu0 0.0
      %484 = vmatpush1.msra.mxu0 0.0
      %485 = vmatprep.subr.mxu0 0.0
      %486 = vmatpush1.msra.mxu0 0.0
      %487 = vmatprep.subr.mxu0 0.0
      %488 = vmatpush1.msra.mxu0 0.0
      %489 = vmatprep.subr.mxu0 0.0
      %490 = vmatpush1.msra.mxu0 0.0
      %491 = vmatprep.subr.mxu0 0.0
      %492 = vmatpush1.msra.mxu0 0.0
      %493 = vmatprep.subr.mxu0 0.0
      %494 = vmatpush1.msra.mxu0 0.0
      %495 = vmatprep.subr.mxu0 0.0
      %496 = vmatpush1.msra.mxu0 0.0
      %497 = vmatprep.subr.mxu0 0.0
      %498 = vmatpush1.msra.mxu0 0.0
      %499 = vmatprep.subr.mxu0 0.0
      %500 = vmatpush1.msra.mxu0 0.0
      %501 = vmatprep.subr.mxu0 0.0
      %502 = vmatpush1.msra.mxu0 0.0
      %503 = vmatprep.subr.mxu0 0.0
      %504 = vmatpush1.msra.mxu0 0.0
      %505 = vmatprep.subr.mxu0 0.0
      %506 = vmatpush1.msra.mxu0 0.0
      %507 = vmatprep.subr.mxu0 0.0
      %508 = vmatpush1.msra.mxu0 0.0
      %509 = vmatprep.subr.mxu0 0.0
      %510 = vmatpush1.msra.mxu0 0.0
      %511 = vmatprep.subr.mxu0 0.0
      %512 = vmatpush1.msra.mxu0 0.0
      %513 = vmatprep.subr.mxu0 0.0
      %514 = vmatpush1.msra.mxu0 0.0
      %515 = vmatprep.subr.mxu0 0.0
      %516 = vmatpush1.msra.mxu0 0.0
      %517 = vmatprep.mubr.f32.mxu0 0.0
      %518 = vmatmul.mubr.f32.gmra.mrb[0].mxu0 %v451
      %v519 = vpop.f32.mrb[0].mxu0
      %v520 = vadd.f32 %v447, %v519
      %v521 = vpop.f32.mrb[0].mxu0
      %v522 = vadd.f32 %v447, %v521
      %523 = vdwg.mxu0
      %524 = vmatprep.subr.mxu0 %v285
      %525 = vmatpush1.msra.mxu0 %v284
      %526 = vmatprep.subr.mxu0 %v306
      %527 = vmatpush1.msra.mxu0 %v305
      %528 = vmatprep.subr.mxu0 %v325
      %529 = vmatpush1.msra.mxu0 %v324
      %530 = vmatprep.subr.mxu0 %v344
      %531 = vmatpush1.msra.mxu0 %v343
      %532 = vmatprep.subr.mxu0 %v363
      %533 = vmatpush1.msra.mxu0 %v362
      %534 = vmatprep.subr.mxu0 %v382
      %535 = vmatpush1.msra.mxu0 %v381
      %536 = vmatprep.subr.mxu0 %v401
      %537 = vmatpush1.msra.mxu0 %v400
      %538 = vmatprep.subr.mxu0 %v420
      %539 = vmatpush1.msra.mxu0 %v419
      %540 = vmatprep.subr.mxu0 %v439
      %541 = vmatpush1.msra.mxu0 %v438
      %542 = vmatprep.subr.mxu0 0.0
      %543 = vmatpush1.msra.mxu0 0.0
      %544 = vmatprep.subr.mxu0 0.0
      %545 = vmatpush1.msra.mxu0 0.0
      %546 = vmatprep.subr.mxu0 0.0
      %547 = vmatpush1.msra.mxu0 0.0
      %548 = vmatprep.subr.mxu0 0.0
      %549 = vmatpush1.msra.mxu0 0.0
      %550 = vmatprep.subr.mxu0 0.0
      %551 = vmatpush1.msra.mxu0 0.0
      %552 = vmatprep.subr.mxu0 0.0
      %553 = vmatpush1.msra.mxu0 0.0
      %554 = vmatprep.subr.mxu0 0.0
      %555 = vmatpush1.msra.mxu0 0.0
      %556 = vmatprep.subr.mxu0 0.0
      %557 = vmatpush1.msra.mxu0 0.0
      %558 = vmatprep.subr.mxu0 0.0
      %559 = vmatpush1.msra.mxu0 0.0
      %560 = vmatprep.subr.mxu0 0.0
      %561 = vmatpush1.msra.mxu0 0.0
      %562 = vmatprep.subr.mxu0 0.0
      %563 = vmatpush1.msra.mxu0 0.0
      %564 = vmatprep.subr.mxu0 0.0
      %565 = vmatpush1.msra.mxu0 0.0
      %566 = vmatprep.subr.mxu0 0.0
      %567 = vmatpush1.msra.mxu0 0.0
      %568 = vmatprep.subr.mxu0 0.0
      %569 = vmatpush1.msra.mxu0 0.0
      %570 = vmatprep.subr.mxu0 0.0
      %571 = vmatpush1.msra.mxu0 0.0
      %572 = vmatprep.subr.mxu0 0.0
      %573 = vmatpush1.msra.mxu0 0.0
      %574 = vmatprep.subr.mxu0 0.0
      %575 = vmatpush1.msra.mxu0 0.0
      %576 = vmatprep.subr.mxu0 0.0
      %577 = vmatpush1.msra.mxu0 0.0
      %578 = vmatprep.subr.mxu0 0.0
      %579 = vmatpush1.msra.mxu0 0.0
      %580 = vmatprep.subr.mxu0 0.0
      %581 = vmatpush1.msra.mxu0 0.0
      %582 = vmatprep.subr.mxu0 0.0
      %583 = vmatpush1.msra.mxu0 0.0
      %584 = vmatprep.subr.mxu0 0.0
      %585 = vmatpush1.msra.mxu0 0.0
      %586 = vmatprep.subr.mxu0 0.0
      %587 = vmatpush1.msra.mxu0 0.0
      %588 = vmatprep.mubr.f32.mxu0 0.0
      %589 = vmatmul.mubr.f32.gmra.mrb[0].mxu0 %v451
      %v590 = vpop.f32.mrb[0].mxu0
      %v591 = vadd.f32 %v447, %v590
      %v592 = vpop.f32.mrb[0].mxu0
      %v593 = vadd.f32 %v447, %v592
      %594 = vdwg.mxu0
      %595 = vst [vmem:[%s278] sm:$0xff] %v520
      %596 = vst [vmem:[%s278 + $0x8] sm:$0xff] %v522
      %597 = vst [vmem:[%s278 + $0x10] sm:$0xff] %v591
      %598 = vst [vmem:[%s278 + $0x18] sm:$0xff] %v593
      %s599 = smul.u32 4, %s20
      %p600 = scmp.lt.s32.totalorder %s19, 1
      %s601 = scalar_select %p600, %s19, 1
      %p602 = scmp.lt.s32.totalorder %s599, 3
      %s603 = scalar_select %p602, %s599, 3
      %s604 = smul.addr %s601, 4
      %s605 = sadd.s32 %s603, %s604
      %s606 = smul.addr %s605, 8
      %s607 = scalar_lea.vmem %s4, %s606
      // Predicated region
      $region37: #{conv_layer_pallas.1} parent=35 // pred_check
        %p608 = pneg %p147
      $region38: #{conv_layer_pallas.1} parent=35 // pred_check_branch
        %610 = sbr.rel (%p608) target = $region40
      $region39: #{conv_layer_pallas.1} parent=35 // pred_region
        %s611 = smul.u32 4, %s20
      $region40: #{conv_layer_pallas.1} parent=35 // pred_fallthru
        _
    $region36: #{conv_layer_pallas.1} parent=5 // pred_fallthru
      _
    %p612 = scmp.le.s32.totalorder 2, %s10
    // Predicated region
    $region41: #{conv_layer_pallas.1} parent=5 // pred_check
      %p613 = pneg %p612
    $region42: #{conv_layer_pallas.1} parent=5 // pred_check_branch
      %615 = sbr.rel (%p613) target = $region44
    $region43: #{conv_layer_pallas.1} parent=5 // pred_region
      %s616 = ssub.s32 %s10, 2
      // Predicated region
      $region45: #{conv_layer_pallas.1} parent=43 // pred_check
        %p617 = pneg %p153
      $region46: #{conv_layer_pallas.1} parent=43 // pred_check_branch
        %619 = sbr.rel (%p617) target = $region48
      $region47: #{conv_layer_pallas.1} parent=43 // pred_region
        %s620 = smul.u32 4, %s22
        %p621 = scmp.lt.s32.totalorder %s21, 1
        %s622 = scalar_select %p621, %s21, 1
        %p623 = scmp.lt.s32.totalorder %s620, 3
        %s624 = scalar_select %p623, %s620, 3
        %s625 = smul.addr %s622, 4
        %s626 = sadd.s32 %s624, %s625
        %s627 = smul.addr %s626, 8
        %s628 = scalar_lea.vmem %s4, %s627
      $region48: #{conv_layer_pallas.1} parent=43 // pred_fallthru
        _
    $region44: #{conv_layer_pallas.1} parent=5 // pred_fallthru
      _
  $region6: #{conv_layer_pallas.1} parent=0 // loop_footer
    %s14 = sadd.s32 1, %s10
  $region7: #{conv_layer_pallas.1} parent=0 // loop_footer_branch
    %9 = sbr.rel target = $region3
  $region8: #{conv_layer_pallas.1} parent=0 // loop_exit
    _

</llo_original>
